<compile_context>
chip_gen: v7x
topology: tpu7x:2x2x1
jax: 0.10.0
libtpu: 0.0.40
codegen_flags: <defaults>
</compile_context>

<pallas_src>
import functools

import jax
import jax.numpy as jnp
from jax.experimental import pallas as pl
from jax.experimental.pallas import tpu as pltpu


# --------------------------------------------------------------------------
# Kernels
# --------------------------------------------------------------------------
def _soft_ce_rows_kernel(x_ref, t_ref, out_ref, *, n_rows: int):
    """Per-row soft-target CE over one (TM, C) row tile; lane-dense output."""
    block_rows = x_ref.shape[0]
    x = x_ref[...].astype(jnp.float32)                      # (TM, C)
    t = t_ref[...].astype(jnp.float32)                      # (TM, C)

    # numerically-stable log-sum-exp over the class axis
    m = jnp.max(x, axis=1, keepdims=True)                   # (TM, 1)
    shifted = x - m                                         # (TM, C)
    lse = jnp.log(jnp.sum(jnp.exp(shifted), axis=1))        # (TM,)

    # loss = sum(-t * (shifted - lse)) = lse * sum(t) - sum(t * shifted)
    tsum = jnp.sum(t, axis=1)                               # (TM,)
    tdot = jnp.sum(t * shifted, axis=1)                     # (TM,)
    losses = lse * tsum - tdot                              # (TM,)

    # Mask rows past the true batch size (partial last tile reads garbage).
    # Keep this mask immediately before the store: masked rows may hold
    # Inf/NaN internally.
    row_ids = (pl.program_id(0) * block_rows
               + jax.lax.broadcasted_iota(jnp.int32, (1, 1, block_rows), 2))
    out_ref[...] = jnp.where(row_ids < n_rows, losses, 0.0)


def _hard_ce_rows_kernel(x_ref, lbl_ref, out_ref, *, n_rows: int):
    """Per-row CE with integer labels (no one-hot materialized)."""
    block_rows, n_cols = x_ref.shape
    x = x_ref[...].astype(jnp.float32)                      # (TM, C)
    lbl = lbl_ref[...]                                      # (TM, 1) int32

    m = jnp.max(x, axis=1, keepdims=True)                   # (TM, 1)
    shifted = x - m
    lse = jnp.log(jnp.sum(jnp.exp(shifted), axis=1))        # (TM,)

    # shifted[row, label] via iota-compare + lane reduce (no HBM one-hot).
    # NOTE: out-of-range labels silently contribute 0 here (loss becomes lse)
    # instead of raising like torch.nn.functional.one_hot would.
    cls = jax.lax.broadcasted_iota(jnp.int32, (block_rows, n_cols), 1)
    x_lbl = jnp.sum(jnp.where(cls == lbl, shifted, 0.0), axis=1)   # (TM,)

    losses = lse - x_lbl                                    # (TM,)

    row_ids = (pl.program_id(0) * block_rows
               + jax.lax.broadcasted_iota(jnp.int32, (1, 1, block_rows), 2))
    out_ref[...] = jnp.where(row_ids < n_rows, losses, 0.0)


# --------------------------------------------------------------------------
# Tile sizing (generation-aware)
# --------------------------------------------------------------------------
_SUBLANE = {4: 8, 2: 16, 1: 32}   # sublane multiple per itemsize


def _vmem_limit_bytes() -> int:
    """Per-kernel VMEM limit: 3/4 of per-core VMEM, capped at 96 MiB.

    Falls back to a v7x-safe 64 MiB capacity assumption if the hardware
    query is unavailable (e.g. interpret mode).
    """
    cap = 64 * 1024 * 1024
    try:
        info = pltpu.get_tpu_info()
        cap = int(getattr(info, "vmem_capacity_bytes", cap))
    except Exception:
        pass
    return min((cap * 3) // 4, 96 * 1024 * 1024)


def _pick_block_rows(n_rows: int, n_cols: int, in_itemsizes, *, hard: bool,
                     vmem_limit: int) -> int:
    """Largest row-tile whose pipelined inputs + in-kernel f32 intermediates
    + outputs fit the VMEM limit with ~20% headroom."""
    sub = max(_SUBLANE.get(int(s), 8) for s in in_itemsizes)
    if n_rows <= sub:
        return n_rows

    budget = (vmem_limit * 4) // 5                     # ~20% headroom

    # double-buffered HBM->VMEM input windows
    per_row = sum(2 * n_cols * int(s) for s in in_itemsizes)
    # in-kernel full-tile temporaries (f32 upcasts, exp, iota/products)
    per_row += 4 * n_cols * 4
    if hard:
        per_row += 2 * 512                             # (TM,1) i32 block pads to 128 lanes
    per_row += 2 * 8 * 4                               # (1,1,TM) f32 out pads to 8 sublanes

    tm = budget // max(1, per_row)

    # Bytes-based cap: ~4 MiB per input window per step amortizes the
    # ~0.35us per-grid-step overhead while keeping multiple pipeline steps.
    biggest_in = max(int(s) for s in in_itemsizes) * n_cols
    tm = min(tm, (4 * 1024 * 1024) // max(1, biggest_in), 8192)

    tm = max(sub, (tm // sub) * sub)                   # sublane-aligned floor
    tm = min(tm, (n_rows // sub) * sub)                # never exceed the array
    return tm


# --------------------------------------------------------------------------
# Wrapper
# --------------------------------------------------------------------------
def soft_cross_entropy_loss(logits, target, reduction: str = "mean"):
    """JAX/Pallas equivalent of SoftCrossEntropyLoss.forward."""
    if reduction not in ("none", "mean", "sum"):
        raise ValueError(f"Unrecognized reduction: {reduction}")

    n, c = logits.shape
    hard = (target.ndim == 1)
    vmem_limit = _vmem_limit_bytes()

    if hard:
        itemsizes = (jnp.dtype(logits.dtype).itemsize,)
    else:
        itemsizes = (jnp.dtype(logits.dtype).itemsize,
                     jnp.dtype(target.dtype).itemsize)

    tm = _pick_block_rows(n, c, itemsizes, hard=hard, vmem_limit=vmem_limit)
    num_tiles = (n + tm - 1) // tm

    if hard:
        labels = target.astype(jnp.int32).reshape(n, 1)
        kernel = functools.partial(_hard_ce_rows_kernel, n_rows=n)
        in_specs = [pl.BlockSpec((tm, c), lambda i: (i, 0)),
                    pl.BlockSpec((tm, 1), lambda i: (i, 0))]
        args = (logits, labels)
    else:
        # keep native dtype (e.g. bf16); the f32 upcast happens in the kernel
        kernel = functools.partial(_soft_ce_rows_kernel, n_rows=n)
        in_specs = [pl.BlockSpec((tm, c), lambda i: (i, 0)),
                    pl.BlockSpec((tm, c), lambda i: (i, 0))]
        args = (logits, target)

    # Lane-dense per-row losses: one (1, 1, TM) row per grid step.
    losses = pl.pallas_call(
        kernel,
        out_shape=jax.ShapeDtypeStruct((num_tiles, 1, tm), jnp.float32),
        grid_spec=pltpu.PrefetchScalarGridSpec(
            num_scalar_prefetch=0,
            grid=(num_tiles,),
            in_specs=in_specs,
            out_specs=pl.BlockSpec((1, 1, tm), lambda i: (i, 0, 0)),
        ),
        compiler_params=pltpu.CompilerParams(
            dimension_semantics=("parallel",),
            vmem_limit_bytes=vmem_limit),
    )(*args)

    losses = losses.reshape(num_tiles * tm)[:n]    # drop padded rows
    if reduction == "none":
        return losses
    if reduction == "sum":
        return jnp.sum(losses)
    return jnp.sum(losses) / jnp.float32(n)        # mean over the true N


# --------------------------------------------------------------------------
# Reference + self-test
# --------------------------------------------------------------------------
def _reference(logits, target, reduction):
    if target.ndim == 1:
        target = jax.nn.one_hot(target, num_classes=logits.shape[-1],
                                dtype=jnp.float32)
    logp = jax.nn.log_softmax(logits.astype(jnp.float32), axis=1)
    losses = jnp.sum(-target.astype(jnp.float32) * logp, axis=1)
    if reduction == "mean":
        return losses.mean()
    if reduction == "sum":
        return losses.sum()
    return losses


if __name__ == "__main__":
    key = jax.random.PRNGKey(0)
    k1, k2, k3, k4, k5 = jax.random.split(key, 5)

    ok = True

    # --- small single-tile case (f32), soft + hard targets, all reductions
    N, C = 8, 32
    logits = jax.random.normal(k1, (N, C), dtype=jnp.float32)
    soft_t = jax.nn.softmax(jax.random.normal(k2, (N, C), dtype=jnp.float32),
                            axis=1)
    hard_t = jax.random.randint(k3, (N,), 0, C)

    for red in ("mean", "sum", "none"):
        out = jax.block_until_ready(soft_cross_entropy_loss(logits, soft_t, red))
        ref = _reference(logits, soft_t, red)
        ok &= bool(jnp.allclose(out, ref, atol=1e-5, rtol=1e-5))

        out_h = jax.block_until_ready(soft_cross_entropy_loss(logits, hard_t, red))
        ref_h = _reference(logits, hard_t, red)
        ok &= bool(jnp.allclose(out_h, ref_h, atol=1e-5, rtol=1e-5))

    # --- multi-tile case with a partial last tile (exercises row masking and
    #     the lane-dense multi-tile output), bf16 inputs (native-dtype path)
    N2, C2 = 200, 32
    logits2 = jax.random.normal(k4, (N2, C2), dtype=jnp.float32).astype(jnp.bfloat16)
    soft_t2 = jax.nn.softmax(
        jax.random.normal(k5, (N2, C2), dtype=jnp.float32), axis=1
    ).astype(jnp.bfloat16)
    hard_t2 = jax.random.randint(k3, (N2,), 0, C2)

    for red in ("mean", "none"):
        out = jax.block_until_ready(soft_cross_entropy_loss(logits2, soft_t2, red))
        ref = _reference(logits2, soft_t2, red)
        ok &= bool(jnp.allclose(out, ref, atol=2e-3, rtol=2e-3))

    out_h = jax.block_until_ready(soft_cross_entropy_loss(logits2, hard_t2, "sum"))
    ref_h = _reference(logits2, hard_t2, "sum")
    ok &= bool(jnp.allclose(out_h, ref_h, atol=2e-3, rtol=2e-3))

    if ok:
        print("KERNEL_OK")
    else:
        raise SystemExit("mismatch vs reference")
</pallas_src>

<mosaic_0001>
module attributes {stable_mosaic.version = 11 : i64} {
  func.func @_soft_ce_rows_kernel(%arg0: i32, %arg1: memref<8x32xf32, #tpu.memory_space<vmem>>, %arg2: memref<8x32xf32, #tpu.memory_space<vmem>>, %arg3: memref<1x1x8xf32, #tpu.memory_space<vmem>>) attributes {dimension_semantics = [#tpu.dimension_semantics<parallel>], iteration_bounds = array<i64: 1>, scalar_prefetch = 0 : i64, scratch_operands = 0 : i64, tpu.core_type = #tpu.core_type<tc>, window_params = [{transform_indices = @transform_0, window_bounds = array<i64: 8, 32>}, {transform_indices = @transform_1, window_bounds = array<i64: 8, 32>}, {transform_indices = @transform_2, window_bounds = array<i64: 1, 1, 8>}]} {
    %c0 = arith.constant 0 : index
    %c0_0 = arith.constant 0 : index
    %0 = vector.load %arg1[%c0, %c0_0] : memref<8x32xf32, #tpu.memory_space<vmem>>, vector<8x32xf32>
    %c0_1 = arith.constant 0 : index
    %c0_2 = arith.constant 0 : index
    %1 = vector.load %arg2[%c0_1, %c0_2] : memref<8x32xf32, #tpu.memory_space<vmem>>, vector<8x32xf32>
    %cst = arith.constant dense<0xFF800000> : vector<8xf32>
    %2 = vector.multi_reduction <maximumf>, %0, %cst [1] : vector<8x32xf32> to vector<8xf32>
    %3 = vector.shape_cast %2 : vector<8xf32> to vector<8x1xf32>
    %4 = vector.broadcast %3 : vector<8x1xf32> to vector<8x32xf32>
    %5 = arith.subf %0, %4 : vector<8x32xf32>
    %6 = math.exp %5 : vector<8x32xf32>
    %cst_3 = arith.constant dense<0.000000e+00> : vector<8xf32>
    %7 = vector.multi_reduction <add>, %6, %cst_3 [1] : vector<8x32xf32> to vector<8xf32>
    %8 = math.log %7 : vector<8xf32>
    %cst_4 = arith.constant dense<0.000000e+00> : vector<8xf32>
    %9 = vector.multi_reduction <add>, %1, %cst_4 [1] : vector<8x32xf32> to vector<8xf32>
    %10 = arith.mulf %1, %5 : vector<8x32xf32>
    %cst_5 = arith.constant dense<0.000000e+00> : vector<8xf32>
    %11 = vector.multi_reduction <add>, %10, %cst_5 [1] : vector<8x32xf32> to vector<8xf32>
    %12 = arith.mulf %8, %9 : vector<8xf32>
    %13 = arith.subf %12, %11 : vector<8xf32>
    %c8_i32 = arith.constant 8 : i32
    %14 = arith.muli %arg0, %c8_i32 : i32
    %15 = tpu.iota {dimensions = array<i32: 2>} : vector<1x1x8xi32>
    %16 = vector.broadcast %14 : i32 to vector<1x1x8xi32>
    %17 = arith.addi %16, %15 : vector<1x1x8xi32>
    %c8_i32_6 = arith.constant 8 : i32
    %18 = vector.broadcast %c8_i32_6 : i32 to vector<1x1x8xi32>
    %19 = arith.cmpi slt, %17, %18 : vector<1x1x8xi32>
    %cst_7 = arith.constant 0.000000e+00 : f32
    %20 = vector.shape_cast %13 : vector<8xf32> to vector<1x1x8xf32>
    %21 = vector.broadcast %cst_7 : f32 to vector<1x1x8xf32>
    %22 = arith.select %19, %20, %21 : vector<1x1x8xi1>, vector<1x1x8xf32>
    %c0_8 = arith.constant 0 : index
    %c0_9 = arith.constant 0 : index
    %c0_10 = arith.constant 0 : index
    %23 = vector.load %arg3[%c0_8, %c0_9, %c0_10] : memref<1x1x8xf32, #tpu.memory_space<vmem>>, vector<1x1x8xf32>
    tpu.vector_store %arg3[%c0_8, %c0_9, %c0_10], %22 {strides = array<i32>} : memref<1x1x8xf32, #tpu.memory_space<vmem>>, vector<1x1x8xf32>,
    return
  }
  func.func @transform_0(%arg0: i32) -> (i32, i32) {
    %c0_i32 = arith.constant 0 : i32
    %c0_i32_0 = arith.constant 0 : i32
    return %arg0, %c0_i32 : i32, i32
  }
  func.func @transform_1(%arg0: i32) -> (i32, i32) {
    %c0_i32 = arith.constant 0 : i32
    %c0_i32_0 = arith.constant 0 : i32
    return %arg0, %c0_i32 : i32, i32
  }
  func.func @transform_2(%arg0: i32) -> (i32, i32, i32) {
    %c0_i32 = arith.constant 0 : i32
    %c0_i32_0 = arith.constant 0 : i32
    %c0_i32_1 = arith.constant 0 : i32
    return %arg0, %c0_i32, %c0_i32_0 : i32, i32, i32
  }
}

</mosaic_0001>

<llo_original>
// kernel: tpu_custom_call.1
$region0: #{tpu_custom_call.1}
  #allocation0 [shape = 'u32[]', space=smem, size = 0x4, offset = 0x4, fixed_abs, tag = 'smem constant byte address 0x4 - core index']
  #allocation1 [shape = 'u32[144,128]{1,0:T(1,128)}', space=vmem, size = 0x12000, scoped, tag = 'internal scratch']
  %s0 = inlined_call_operand.hbm [shape: f32[8,32], index: 0, kind: input, shape index: {}]
  %s1 = inlined_call_operand.hbm [shape: f32[8,32], index: 1, kind: input, shape index: {}]
  %s2 = inlined_call_operand.hbm [shape: f32[1,1,8], index: 2, kind: output, shape index: {}]
  %s3 = sld [smem:[#allocation0]]
  $region26: #{tpu_custom_call.1} parent=0
    _
  %s5 = ssub.s32 1, %s3
  %s6 = scalar_select 0, %s5, %s3
  $region1: #{tpu_custom_call.1} parent=0
    #allocation2 [shape = 'u8[4096]{0}', space=vmem, size = 0x1000, scoped, tag = 'input window, operand 0, single buffered']
    #allocation3 [shape = 's32[1]{0}', space=sflag, size = 0x4, scoped, tag = 'scoped memory for tpu_custom_call.1']
    #allocation4 [shape = 's32[1]{0}', space=sflag, size = 0x4, scoped, tag = 'scoped memory for tpu_custom_call.1']
    #allocation5 [shape = 'u8[4096]{0}', space=vmem, size = 0x1000, scoped, tag = 'input window, operand 1, single buffered']
    #allocation6 [shape = 's32[1]{0}', space=sflag, size = 0x4, scoped, tag = 'scoped memory for tpu_custom_call.1']
    #allocation7 [shape = 'u8[512]{0}', space=vmem, size = 0x400, scoped, tag = 'output window, operand 0, single buffered']
    %7 = vsyncpa [#allocation3], 0
    %8 = vsyncpa [#allocation6], 0
    %9 = vsyncpa [#allocation4], 0
    // Predicated region
    $region2: #{tpu_custom_call.1} parent=1 // pred_check
      _
    $region3: #{tpu_custom_call.1} parent=1 // pred_check_branch
      %11 = sbr.rel (0) target = $region5
    $region4: #{tpu_custom_call.1} parent=1 // pred_region
      %s13 = ssub.s32 128, 128
      %14 = vsyncadd [#allocation3], %s13
      %s16 = sshll.u32 [#allocation2], 4
      %s17 = int_to_ptr.vmem [resolvable:$true] %s16
      %19 = dma.hbm_to_vmem [thread:$0]  %s0, 128, %s17, [#allocation3]
    $region5: #{tpu_custom_call.1} parent=1 // pred_fallthru
      _
    // Predicated region
    $region6: #{tpu_custom_call.1} parent=1 // pred_check
      _
    $region7: #{tpu_custom_call.1} parent=1 // pred_check_branch
      %21 = sbr.rel (0) target = $region9
    $region8: #{tpu_custom_call.1} parent=1 // pred_region
      %s23 = ssub.s32 128, 128
      %24 = vsyncadd [#allocation6], %s23
      %s26 = sshll.u32 [#allocation5], 4
      %s27 = int_to_ptr.vmem [resolvable:$true] %s26
      %29 = dma.hbm_to_vmem [thread:$0]  %s1, 128, %s27, [#allocation6]
    $region9: #{tpu_custom_call.1} parent=1 // pred_fallthru
      _
    // Predicated region
    $region10: #{tpu_custom_call.1} parent=1 // pred_check
      _
    $region11: #{tpu_custom_call.1} parent=1 // pred_check_branch
      %31 = sbr.rel (0) target = $region13
    $region12: #{tpu_custom_call.1} parent=1 // pred_region
      %32 = dma.done [#allocation3], 128
    $region13: #{tpu_custom_call.1} parent=1 // pred_fallthru
      _
    // Predicated region
    $region14: #{tpu_custom_call.1} parent=1 // pred_check
      _
    $region15: #{tpu_custom_call.1} parent=1 // pred_check_branch
      %34 = sbr.rel (0) target = $region17
    $region16: #{tpu_custom_call.1} parent=1 // pred_region
      %35 = dma.done [#allocation6], 128
    $region17: #{tpu_custom_call.1} parent=1 // pred_fallthru
      _
    %v36 = vld [vmem:[#allocation2] sm:$0xff]
    %v37 = vld [vmem:[#allocation5] sm:$0xff]
    %vm38 = vcmask 261120
    %v39 = vsel %vm38, %v36, -inf
    %40 = vmax.xlane.f32.xlu0 %v39
    %v41 = vpop.xlane.xlu0 %40
    %v42 = vsub.f32 %v36, %v41
    %v43 = vmul.f32 %v42, 1.442695
    %v44 = vpow.pop %v43
    %v45 = vsel %vm38, %v44, 0.0
    %46 = vadd.xlane.f32.xlu0 %v45
    %v47 = vpop.xlane.xlu0 %46
    %v48 = vlog2.pop %v47
    %v49 = vmul.f32 %v48, 0.6931472
    %v50 = vsel %vm38, %v37, 0.0
    %51 = vadd.xlane.f32.xlu0 %v50
    %v52 = vpop.xlane.xlu0 %51
    %v53 = vmul.f32 %v37, %v42
    %v54 = vsel %vm38, %v53, 0.0
    %55 = vadd.xlane.f32.xlu0 %v54
    %v56 = vpop.xlane.xlu0 %55
    %v57 = vmul.f32 %v49, %v52
    %v58 = vsub.f32 %v57, %v56
    %s59 = smul.u32 0, 8
    %v60 = vlaneseq
    %v61 = vand.u32 %v60, 127
    %v62 = vstv %s59
    %v63 = vadd.s32 %v62, %v61
    %vm64 = vcmp.lt.s32.totalorder %v63, 8
    %v66 = vlaneseq
    %v67 = vshrl.u32 %v66, 7
    %v68 = vsub.s32 %v61, %v67
    %v69 = vrot.slane %v58, %v68
    %v71 = vsel %vm64, %v69, 0.0
    %vm72 = vcmask 57344
    %73 = vst.msk [vmem:[#allocation7] sm:$0x1] %vm72, %v71
    // Predicated region
    $region18: #{tpu_custom_call.1} parent=1 // pred_check
      _
    $region19: #{tpu_custom_call.1} parent=1 // pred_check_branch
      %75 = sbr.rel (0) target = $region21
    $region20: #{tpu_custom_call.1} parent=1 // pred_region
      %s77 = ssub.s32 16, 16
      %78 = vsyncadd [#allocation4], %s77
      %s80 = sshll.u32 [#allocation7], 4
      %s81 = int_to_ptr.vmem [resolvable:$true] %s80
      %83 = dma.vmem_to_hbm [thread:$0]  %s81, 16, %s2, [#allocation4]
    $region21: #{tpu_custom_call.1} parent=1 // pred_fallthru
      _
    // Predicated region
    $region22: #{tpu_custom_call.1} parent=1 // pred_check
      _
    $region23: #{tpu_custom_call.1} parent=1 // pred_check_branch
      %85 = sbr.rel (0) target = $region25
    $region24: #{tpu_custom_call.1} parent=1 // pred_region
      %86 = dma.done [#allocation4], 16
    $region25: #{tpu_custom_call.1} parent=1 // pred_fallthru
      _
    %87 = vsyncpa [#allocation3], 1
    %88 = vsyncpa [#allocation6], 1
    %89 = vsyncpa [#allocation4], 1

</llo_original>
